<compile_context>
chip_gen: v5e
topology: v5e:2x2
jax: 0.10.0
libtpu: 0.0.40
codegen_flags: <defaults>
</compile_context>

<pallas_src>
import functools

import jax
import jax.numpy as jnp
from jax.experimental import pallas as pl
from jax.experimental.pallas import tpu as pltpu

# ---------------- synthetic config (mirrors DebertaV2Config fields used) ------
VOCAB_SIZE = 100
TYPE_VOCAB_SIZE = 2            # > 0  -> token_type_embeddings present
MAX_POSITION_EMBEDDINGS = 32
EMBEDDING_SIZE = 32            # != HIDDEN_SIZE -> embed_proj (bias-free Linear)
HIDDEN_SIZE = 64
LAYER_NORM_EPS = 1e-7
PAD_TOKEN_ID = 0
POSITION_BIASED_INPUT = True

_TM_MAX = 2048                 # token rows per grid step
_LANE = 128


def _round_up(x, m):
    return (x + m - 1) // m * m


# ------------------------------- kernel ---------------------------------------
def _embeddings_kernel(ids_ref, wtab_ref, pttab_ref, g_ref, b_ref, o_ref, *, eps):
    """split one-hot lookups (MXU, bf16) -> LayerNorm -> gamma/beta -> mask."""
    ids = ids_ref[...]                                   # (TM, 4) int32
    word_id = ids[:, 0:1]                                # (TM, 1)
    pos_id = ids[:, 1:2]                                 # (TM, 1)
    type_id = ids[:, 2:3]                                # (TM, 1) (offset pre-added)
    mask = pltpu.bitcast(ids[:, 3:4], jnp.float32)       # (TM, 1) f32 mask

    k_word = wtab_ref.shape[0]
    k_pt = pttab_ref.shape[0]

    # (1, K) iotas; broadcasting inside the compares expands to (TM, K).
    iota_w = jax.lax.broadcasted_iota(jnp.int32, (1, k_word), 1)
    iota_pt = jax.lax.broadcasted_iota(jnp.int32, (1, k_pt), 1)

    # bf16 one-hot / two-hot selection matrices (0/1 exact in bf16).
    word_hot = (iota_w == word_id).astype(jnp.bfloat16)                   # (TM, Kw)
    pt_hot = ((iota_pt == pos_id) | (iota_pt == type_id)).astype(jnp.bfloat16)

    # MXU does the gathers + sums + embed_proj (proj pre-folded into tables).
    h = jnp.dot(word_hot, wtab_ref[...], preferred_element_type=jnp.float32)
    h = h + jnp.dot(pt_hot, pttab_ref[...], preferred_element_type=jnp.float32)

    # LayerNorm (exact two-pass variance).
    mu = jnp.mean(h, axis=-1, keepdims=True)
    d = h - mu
    var = jnp.mean(d * d, axis=-1, keepdims=True)
    y = d * jax.lax.rsqrt(var + eps)
    y = y * g_ref[...] + b_ref[...]                      # gamma/beta (1, H)
    o_ref[...] = y * mask                                # attention mask (TM, 1)


# ------------------------------ params ----------------------------------------
def init_params(key):
    k_we, k_pe, k_te, k_pr, _, _ = jax.random.split(key, 6)
    word_emb = 0.02 * jax.random.normal(k_we, (VOCAB_SIZE, EMBEDDING_SIZE), jnp.float32)
    # nn.Embedding(padding_idx=pad_token_id): padding row is zero
    word_emb = word_emb.at[PAD_TOKEN_ID].set(0.0)
    pos_emb = 0.02 * jax.random.normal(k_pe, (MAX_POSITION_EMBEDDINGS, EMBEDDING_SIZE), jnp.float32)
    tok_emb = 0.02 * jax.random.normal(k_te, (TYPE_VOCAB_SIZE, EMBEDDING_SIZE), jnp.float32)
    proj_w = 0.02 * jax.random.normal(k_pr, (EMBEDDING_SIZE, HIDDEN_SIZE), jnp.float32)
    gamma = jnp.ones((1, HIDDEN_SIZE), jnp.float32)
    beta = jnp.zeros((1, HIDDEN_SIZE), jnp.float32)
    return dict(word_emb=word_emb, pos_emb=pos_emb, tok_emb=tok_emb,
                proj_w=proj_w, gamma=gamma, beta=beta)


def _build_folded_tables(params):
    """Fold embed_proj into the tiny tables; word table and [pos|type] table."""
    if EMBEDDING_SIZE != HIDDEN_SIZE:
        def fold(t):
            return jnp.dot(t, params["proj_w"], preferred_element_type=jnp.float32)
    else:
        def fold(t):
            return t

    word_t = fold(params["word_emb"])                                  # (V, H)
    if POSITION_BIASED_INPUT:
        pos_t = fold(params["pos_emb"])                                # (P, H)
    else:
        pos_t = jnp.zeros((MAX_POSITION_EMBEDDINGS, HIDDEN_SIZE), jnp.float32)
    if TYPE_VOCAB_SIZE > 0:
        tok_t = fold(params["tok_emb"])                                # (Tt, H)
    else:
        tok_t = jnp.zeros((1, HIDDEN_SIZE), jnp.float32)

    pt_t = jnp.concatenate([pos_t, tok_t], axis=0)                     # (P+Tt, H)
    type_offset = pos_t.shape[0]

    kw = _round_up(word_t.shape[0], _LANE)       # lane-align each contraction dim
    kpt = _round_up(pt_t.shape[0], _LANE)
    word_t = jnp.pad(word_t, ((0, kw - word_t.shape[0]), (0, 0)))
    pt_t = jnp.pad(pt_t, ((0, kpt - pt_t.shape[0]), (0, 0)))

    # bf16 tables for the MXU; accumulation stays f32 in-kernel.
    return word_t.astype(jnp.bfloat16), pt_t.astype(jnp.bfloat16), type_offset


# ------------------------------ forward ---------------------------------------
def deberta_v2_embeddings(params, input_ids, token_type_ids=None,
                          position_ids=None, mask=None):
    B, S = input_ids.shape
    T = B * S
    H = HIDDEN_SIZE

    if position_ids is None:
        position_ids = jnp.arange(S, dtype=jnp.int32)[None, :]
    position_ids = jnp.broadcast_to(position_ids.astype(jnp.int32), (B, S))
    if token_type_ids is None:
        token_type_ids = jnp.zeros((B, S), jnp.int32)
    if mask is None:
        mask = jnp.ones((B, S), jnp.float32)

    word_tab, pt_tab, type_off = _build_folded_tables(params)

    # Clamp ids so out-of-range values cannot silently alias other rows.
    word_ids = jnp.clip(input_ids.astype(jnp.int32), 0, VOCAB_SIZE - 1)
    pos_ids = jnp.clip(position_ids, 0, MAX_POSITION_EMBEDDINGS - 1)
    type_ids = jnp.clip(token_type_ids.astype(jnp.int32),
                        0, max(TYPE_VOCAB_SIZE - 1, 0)) + type_off
    mask_bits = jax.lax.bitcast_convert_type(mask.astype(jnp.float32), jnp.int32)

    # Single packed (T, 4) int32 stream: [word, pos, type(+off), mask-bits].
    ids4 = jnp.stack([word_ids, pos_ids, type_ids, mask_bits],
                     axis=-1).reshape(T, 4)

    # Tile the token axis; pad T up to a multiple of the tile.
    tm = min(_TM_MAX, _round_up(T, 8))
    t_pad = _round_up(T, tm)
    if t_pad != T:
        ids4 = jnp.pad(ids4, ((0, t_pad - T), (0, 0)))   # pad rows: mask bits 0 -> 0.0
    grid = (t_pad // tm,)

    kernel = functools.partial(_embeddings_kernel, eps=LAYER_NORM_EPS)

    out_flat = pl.pallas_call(
        kernel,
        out_shape=jax.ShapeDtypeStruct((t_pad, H), jnp.float32),
        grid=grid,
        in_specs=[
            pl.BlockSpec((tm, 4), lambda i: (i, 0)),                 # ids+mask (moving)
            pl.BlockSpec((word_tab.shape[0], H), lambda i: (0, 0)),  # word table (resident)
            pl.BlockSpec((pt_tab.shape[0], H), lambda i: (0, 0)),    # pos+type table (resident)
            pl.BlockSpec((1, H), lambda i: (0, 0)),                  # gamma (resident)
            pl.BlockSpec((1, H), lambda i: (0, 0)),                  # beta (resident)
        ],
        out_specs=pl.BlockSpec((tm, H), lambda i: (i, 0)),
        compiler_params=pltpu.CompilerParams(
            dimension_semantics=("parallel",),
            vmem_limit_bytes=32 * 1024 * 1024),
    )(ids4, word_tab, pt_tab, params["gamma"], params["beta"])

    return out_flat[:T].reshape(B, S, H)


# ------------------------------ reference -------------------------------------
def _reference(params, input_ids, token_type_ids, mask):
    B, S = input_ids.shape
    pos_ids = jnp.arange(S, dtype=jnp.int32)[None, :]
    x = jnp.take(params["word_emb"], input_ids, axis=0)
    if POSITION_BIASED_INPUT:
        x = x + jnp.take(params["pos_emb"], pos_ids, axis=0)
    if TYPE_VOCAB_SIZE > 0:
        x = x + jnp.take(params["tok_emb"], token_type_ids, axis=0)
    if EMBEDDING_SIZE != HIDDEN_SIZE:
        x = jnp.dot(x, params["proj_w"])
    mu = jnp.mean(x, axis=-1, keepdims=True)
    var = jnp.mean((x - mu) ** 2, axis=-1, keepdims=True)
    y = (x - mu) / jnp.sqrt(var + LAYER_NORM_EPS)
    y = y * params["gamma"][0] + params["beta"][0]
    return y * mask[..., None]


if __name__ == "__main__":
    key = jax.random.PRNGKey(0)
    k_params, k_ids, k_tt, k_mask = jax.random.split(key, 4)

    params = init_params(k_params)

    B, S = 2, 8
    input_ids = jax.random.randint(k_ids, (B, S), 1, VOCAB_SIZE, dtype=jnp.int32)
    # include a padding token to exercise padding_idx row
    input_ids = input_ids.at[0, -1].set(PAD_TOKEN_ID)
    token_type_ids = jax.random.randint(k_tt, (B, S), 0, TYPE_VOCAB_SIZE, dtype=jnp.int32)
    mask = jnp.ones((B, S), jnp.float32).at[0, -1].set(0.0)

    out = deberta_v2_embeddings(params, input_ids, token_type_ids, mask=mask)
    jax.block_until_ready(out)

    ref = _reference(params, input_ids, token_type_ids, mask)

    assert out.shape == (B, S, HIDDEN_SIZE)
    assert bool(jnp.all(jnp.isfinite(out)))
    assert bool(jnp.allclose(out, ref, rtol=2e-2, atol=2e-2)), \
        f"max abs diff = {float(jnp.max(jnp.abs(out - ref)))}"
    print("KERNEL_OK")
</pallas_src>

<mosaic_0001>
module attributes {stable_mosaic.version = 11 : i64} {
  func.func @_embeddings_kernel(%arg0: i32, %arg1: memref<16x4xi32, #tpu.memory_space<vmem>>, %arg2: memref<128x64xbf16, #tpu.memory_space<vmem>>, %arg3: memref<128x64xbf16, #tpu.memory_space<vmem>>, %arg4: memref<1x64xf32, #tpu.memory_space<vmem>>, %arg5: memref<1x64xf32, #tpu.memory_space<vmem>>, %arg6: memref<16x64xf32, #tpu.memory_space<vmem>>) attributes {dimension_semantics = [#tpu.dimension_semantics<parallel>], iteration_bounds = array<i64: 1>, scalar_prefetch = 0 : i64, scratch_operands = 0 : i64, tpu.core_type = #tpu.core_type<tc>, window_params = [{transform_indices = @transform_0, window_bounds = array<i64: 16, 4>}, {pipeline_mode = #tpu.pipeline_mode<synchronous>, transform_indices = @transform_1, window_bounds = array<i64: 128, 64>}, {pipeline_mode = #tpu.pipeline_mode<synchronous>, transform_indices = @transform_2, window_bounds = array<i64: 128, 64>}, {pipeline_mode = #tpu.pipeline_mode<synchronous>, transform_indices = @transform_3, window_bounds = array<i64: 1, 64>}, {pipeline_mode = #tpu.pipeline_mode<synchronous>, transform_indices = @transform_4, window_bounds = array<i64: 1, 64>}, {transform_indices = @transform_5, window_bounds = array<i64: 16, 64>}]} {
    %c0 = arith.constant 0 : index
    %c0_0 = arith.constant 0 : index
    %0 = vector.load %arg1[%c0, %c0_0] : memref<16x4xi32, #tpu.memory_space<vmem>>, vector<16x4xi32>
    %1 = vector.extract_strided_slice %0 {offsets = [0, 0], sizes = [16, 1], strides = [1, 1]} : vector<16x4xi32> to vector<16x1xi32>
    %2 = vector.extract_strided_slice %0 {offsets = [0, 1], sizes = [16, 1], strides = [1, 1]} : vector<16x4xi32> to vector<16x1xi32>
    %3 = vector.extract_strided_slice %0 {offsets = [0, 2], sizes = [16, 1], strides = [1, 1]} : vector<16x4xi32> to vector<16x1xi32>
    %4 = vector.extract_strided_slice %0 {offsets = [0, 3], sizes = [16, 1], strides = [1, 1]} : vector<16x4xi32> to vector<16x1xi32>
    %5 = tpu.bitcast %4 : vector<16x1xi32> -> vector<16x1xf32>
    %6 = tpu.iota {dimensions = array<i32: 1>} : vector<1x128xi32>
    %7 = tpu.iota {dimensions = array<i32: 1>} : vector<1x128xi32>
    %8 = vector.broadcast %6 : vector<1x128xi32> to vector<16x128xi32>
    %9 = vector.broadcast %1 : vector<16x1xi32> to vector<16x128xi32>
    %10 = arith.cmpi eq, %8, %9 : vector<16x128xi32>
    %11 = arith.extui %10 : vector<16x128xi1> to vector<16x128xi32>
    %12 = arith.sitofp %11 : vector<16x128xi32> to vector<16x128xf32>
    %13 = arith.truncf %12 : vector<16x128xf32> to vector<16x128xbf16>
    %14 = vector.broadcast %7 : vector<1x128xi32> to vector<16x128xi32>
    %15 = vector.broadcast %2 : vector<16x1xi32> to vector<16x128xi32>
    %16 = arith.cmpi eq, %14, %15 : vector<16x128xi32>
    %17 = vector.broadcast %7 : vector<1x128xi32> to vector<16x128xi32>
    %18 = vector.broadcast %3 : vector<16x1xi32> to vector<16x128xi32>
    %19 = arith.cmpi eq, %17, %18 : vector<16x128xi32>
    %20 = arith.ori %16, %19 : vector<16x128xi1>
    %21 = arith.extui %20 : vector<16x128xi1> to vector<16x128xi32>
    %22 = arith.sitofp %21 : vector<16x128xi32> to vector<16x128xf32>
    %23 = arith.truncf %22 : vector<16x128xf32> to vector<16x128xbf16>
    %c0_1 = arith.constant 0 : index
    %c0_2 = arith.constant 0 : index
    %24 = vector.load %arg2[%c0_1, %c0_2] : memref<128x64xbf16, #tpu.memory_space<vmem>>, vector<128x64xbf16>
    %cst = arith.constant dense<0.000000e+00> : vector<16x64xf32>
    %25 = tpu.matmul %13, %24, %cst {dimension_numbers = #tpu.dot_dimension_numbers<[1], [0], [0], [1], [0, 0, 1, 1], [], []>} : vector<16x128xbf16>, vector<128x64xbf16>, vector<16x64xf32> -> vector<16x64xf32>
    %c0_3 = arith.constant 0 : index
    %c0_4 = arith.constant 0 : index
    %26 = vector.load %arg3[%c0_3, %c0_4] : memref<128x64xbf16, #tpu.memory_space<vmem>>, vector<128x64xbf16>
    %cst_5 = arith.constant dense<0.000000e+00> : vector<16x64xf32>
    %27 = tpu.matmul %23, %26, %cst_5 {dimension_numbers = #tpu.dot_dimension_numbers<[1], [0], [0], [1], [0, 0, 1, 1], [], []>} : vector<16x128xbf16>, vector<128x64xbf16>, vector<16x64xf32> -> vector<16x64xf32>
    %28 = arith.addf %25, %27 : vector<16x64xf32>
    %cst_6 = arith.constant dense<0.000000e+00> : vector<16xf32>
    %29 = vector.multi_reduction <add>, %28, %cst_6 [1] : vector<16x64xf32> to vector<16xf32>
    %30 = vector.shape_cast %29 : vector<16xf32> to vector<16x1xf32>
    %cst_7 = arith.constant 6.400000e+01 : f32
    %31 = vector.broadcast %cst_7 : f32 to vector<16x1xf32>
    %32 = arith.divf %30, %31 : vector<16x1xf32>
    %33 = vector.broadcast %32 : vector<16x1xf32> to vector<16x64xf32>
    %34 = arith.subf %28, %33 : vector<16x64xf32>
    %35 = arith.mulf %34, %34 : vector<16x64xf32>
    %cst_8 = arith.constant dense<0.000000e+00> : vector<16xf32>
    %36 = vector.multi_reduction <add>, %35, %cst_8 [1] : vector<16x64xf32> to vector<16xf32>
    %37 = vector.shape_cast %36 : vector<16xf32> to vector<16x1xf32>
    %cst_9 = arith.constant 6.400000e+01 : f32
    %38 = vector.broadcast %cst_9 : f32 to vector<16x1xf32>
    %39 = arith.divf %37, %38 : vector<16x1xf32>
    %cst_10 = arith.constant 1.000000e-07 : f32
    %40 = vector.broadcast %cst_10 : f32 to vector<16x1xf32>
    %41 = arith.addf %39, %40 : vector<16x1xf32>
    %42 = math.rsqrt %41 : vector<16x1xf32>
    %43 = vector.broadcast %42 : vector<16x1xf32> to vector<16x64xf32>
    %44 = arith.mulf %34, %43 : vector<16x64xf32>
    %c0_11 = arith.constant 0 : index
    %c0_12 = arith.constant 0 : index
    %45 = vector.load %arg4[%c0_11, %c0_12] : memref<1x64xf32, #tpu.memory_space<vmem>>, vector<1x64xf32>
    %46 = vector.broadcast %45 : vector<1x64xf32> to vector<16x64xf32>
    %47 = arith.mulf %44, %46 : vector<16x64xf32>
    %c0_13 = arith.constant 0 : index
    %c0_14 = arith.constant 0 : index
    %48 = vector.load %arg5[%c0_13, %c0_14] : memref<1x64xf32, #tpu.memory_space<vmem>>, vector<1x64xf32>
    %49 = vector.broadcast %48 : vector<1x64xf32> to vector<16x64xf32>
    %50 = arith.addf %47, %49 : vector<16x64xf32>
    %51 = vector.broadcast %5 : vector<16x1xf32> to vector<16x64xf32>
    %52 = arith.mulf %50, %51 : vector<16x64xf32>
    %c0_15 = arith.constant 0 : index
    %c0_16 = arith.constant 0 : index
    %53 = vector.load %arg6[%c0_15, %c0_16] : memref<16x64xf32, #tpu.memory_space<vmem>>, vector<16x64xf32>
    tpu.vector_store %arg6[%c0_15, %c0_16], %52 {strides = array<i32>} : memref<16x64xf32, #tpu.memory_space<vmem>>, vector<16x64xf32>,
    return
  }
  func.func @transform_0(%arg0: i32) -> (i32, i32) {
    %c0_i32 = arith.constant 0 : i32
    %c0_i32_0 = arith.constant 0 : i32
    return %arg0, %c0_i32 : i32, i32
  }
  func.func @transform_1(%arg0: i32) -> (i32, i32) {
    %c0_i32 = arith.constant 0 : i32
    %c0_i32_0 = arith.constant 0 : i32
    %c0_i32_1 = arith.constant 0 : i32
    return %c0_i32, %c0_i32_0 : i32, i32
  }
  func.func @transform_2(%arg0: i32) -> (i32, i32) {
    %c0_i32 = arith.constant 0 : i32
    %c0_i32_0 = arith.constant 0 : i32
    %c0_i32_1 = arith.constant 0 : i32
    return %c0_i32, %c0_i32_0 : i32, i32
  }
  func.func @transform_3(%arg0: i32) -> (i32, i32) {
    %c0_i32 = arith.constant 0 : i32
    %c0_i32_0 = arith.constant 0 : i32
    %c0_i32_1 = arith.constant 0 : i32
    return %c0_i32, %c0_i32_0 : i32, i32
  }
  func.func @transform_4(%arg0: i32) -> (i32, i32) {
    %c0_i32 = arith.constant 0 : i32
    %c0_i32_0 = arith.constant 0 : i32
    %c0_i32_1 = arith.constant 0 : i32
    return %c0_i32, %c0_i32_0 : i32, i32
  }
  func.func @transform_5(%arg0: i32) -> (i32, i32) {
    %c0_i32 = arith.constant 0 : i32
    %c0_i32_0 = arith.constant 0 : i32
    return %arg0, %c0_i32 : i32, i32
  }
}

</mosaic_0001>

<llo_original>
// kernel: tpu_custom_call.1
$region0: #{tpu_custom_call.1}
  #allocation0 [shape = 'u32[]', space=smem, size = 0x4, offset = 0x4, fixed_abs, tag = 'smem constant byte address 0x4 - core index']
  #allocation1 [shape = 'u32[72,128]{1,0:T(1,128)}', space=vmem, size = 0x9000, scoped, tag = 'internal scratch']
  %s0 = inlined_call_operand.vmem [shape: s32[16,4], index: 0, kind: input, shape index: {}]
  %s1 = inlined_call_operand.vmem [shape: bf16[128,64], index: 1, kind: input, shape index: {}]
  %s2 = inlined_call_operand.vmem [shape: bf16[128,64], index: 2, kind: input, shape index: {}]
  %s3 = inlined_call_operand.vmem [shape: f32[1,64], index: 3, kind: input, shape index: {}]
  %s4 = inlined_call_operand.vmem [shape: f32[1,64], index: 4, kind: input, shape index: {}]
  %s5 = inlined_call_operand.hbm [shape: f32[16,64], index: 5, kind: output, shape index: {}]
  %s6 = sld [smem:[#allocation0]]
  $region30: #{tpu_custom_call.1} parent=0
    _
  %s8 = ssub.s32 1, %s6
  %s9 = scalar_select 0, %s8, %s6
  $region1: #{tpu_custom_call.1} parent=0
    #allocation2 [shape = 'u8[8192]{0}', space=vmem, size = 0x2000, scoped, tag = 'output window, operand 0, single buffered']
    #allocation3 [shape = 's32[1]{0}', space=sflag, size = 0x4, scoped, tag = 'scoped memory for tpu_custom_call.1']
    %10 = vsyncpa [#allocation3], 0
    // Predicated region
    $region2: #{tpu_custom_call.1} parent=1 // pred_check
      _
    $region3: #{tpu_custom_call.1} parent=1 // pred_check_branch
      %12 = sbr.rel (0) target = $region5
    $region4: #{tpu_custom_call.1} parent=1 // pred_region
      _
    $region5: #{tpu_custom_call.1} parent=1 // pred_fallthru
      _
    // Predicated region
    $region6: #{tpu_custom_call.1} parent=1 // pred_check
      _
    $region7: #{tpu_custom_call.1} parent=1 // pred_check_branch
      %14 = sbr.rel (0) target = $region9
    $region8: #{tpu_custom_call.1} parent=1 // pred_region
      _
    $region9: #{tpu_custom_call.1} parent=1 // pred_fallthru
      _
    // Predicated region
    $region10: #{tpu_custom_call.1} parent=1 // pred_check
      _
    $region11: #{tpu_custom_call.1} parent=1 // pred_check_branch
      %16 = sbr.rel (0) target = $region13
    $region12: #{tpu_custom_call.1} parent=1 // pred_region
      _
    $region13: #{tpu_custom_call.1} parent=1 // pred_fallthru
      _
    // Predicated region
    $region14: #{tpu_custom_call.1} parent=1 // pred_check
      _
    $region15: #{tpu_custom_call.1} parent=1 // pred_check_branch
      %18 = sbr.rel (0) target = $region17
    $region16: #{tpu_custom_call.1} parent=1 // pred_region
      _
    $region17: #{tpu_custom_call.1} parent=1 // pred_fallthru
      _
    // Predicated region
    $region18: #{tpu_custom_call.1} parent=1 // pred_check
      _
    $region19: #{tpu_custom_call.1} parent=1 // pred_check_branch
      %20 = sbr.rel (0) target = $region21
    $region20: #{tpu_custom_call.1} parent=1 // pred_region
      _
    $region21: #{tpu_custom_call.1} parent=1 // pred_fallthru
      _
    %v21 = vld [vmem:[%s0] sm:$0xff]
    %v22 = vld [vmem:[%s0 + $0x8] sm:$0xff]
    %v23 = vlaneseq
    %v24 = vand.u32 %v23, 127
    %25 = vset.pattern.permute.xlu0 0
    %26 = vperm.xlu0 %25, %v21
    %v27 = vpop.permute.xlu0 %26
    %28 = vset.pattern.permute.xlu0 0
    %29 = vperm.xlu0 %28, %v22
    %v30 = vpop.permute.xlu0 %29
    %vm31 = vcmp.eq.s32.totalorder %v24, %v27
    %vm32 = vcmp.eq.s32.totalorder %v24, %v30
    %v33 = vsel %vm31, 1, 0
    %v34 = vsel %vm32, 1, 0
    %v35 = vcvt.s32.f32 %v33
    %v36 = vcvt.s32.f32 %v34
    %v37 = vpack.c.bf16 %v36, %v35
    %38 = vset.pattern.permute.xlu0 1
    %39 = vperm.xlu0 %38, %v21
    %v40 = vpop.permute.xlu0 %39
    %41 = vset.pattern.permute.xlu0 1
    %42 = vperm.xlu0 %41, %v22
    %v43 = vpop.permute.xlu0 %42
    %vm44 = vcmp.eq.s32.totalorder %v24, %v40
    %vm45 = vcmp.eq.s32.totalorder %v24, %v43
    %46 = vset.pattern.permute.xlu0 2
    %47 = vperm.xlu0 %46, %v21
    %v48 = vpop.permute.xlu0 %47
    %49 = vset.pattern.permute.xlu0 2
    %50 = vperm.xlu0 %49, %v22
    %v51 = vpop.permute.xlu0 %50
    %vm52 = vcmp.eq.s32.totalorder %v24, %v48
    %vm53 = vcmp.eq.s32.totalorder %v24, %v51
    %vm54 = vmor %vm44, %vm52
    %vm55 = vmor %vm45, %vm53
    %v56 = vsel %vm54, 1, 0
    %v57 = vsel %vm55, 1, 0
    %v58 = vcvt.s32.f32 %v56
    %v59 = vcvt.s32.f32 %v57
    %v60 = vpack.c.bf16 %v59, %v58
    %v61 = vld [vmem:[%s1] sm:$0xf]
    %v62 = vld [vmem:[%s1 + $0x4] sm:$0xf]
    %v63 = vld [vmem:[%s1 + $0x8] sm:$0xf]
    %v64 = vld [vmem:[%s1 + $0xc] sm:$0xf]
    %v65 = vld [vmem:[%s1 + $0x10] sm:$0xf]
    %v66 = vld [vmem:[%s1 + $0x14] sm:$0xf]
    %v67 = vld [vmem:[%s1 + $0x18] sm:$0xf]
    %v68 = vld [vmem:[%s1 + $0x1c] sm:$0xf]
    %v69 = vld [vmem:[%s1 + $0x20] sm:$0xf]
    %v70 = vld [vmem:[%s1 + $0x24] sm:$0xf]
    %v71 = vld [vmem:[%s1 + $0x28] sm:$0xf]
    %v72 = vld [vmem:[%s1 + $0x2c] sm:$0xf]
    %v73 = vld [vmem:[%s1 + $0x30] sm:$0xf]
    %v74 = vld [vmem:[%s1 + $0x34] sm:$0xf]
    %v75 = vld [vmem:[%s1 + $0x38] sm:$0xf]
    %v76 = vld [vmem:[%s1 + $0x3c] sm:$0xf]
    %v77 = vld [vmem:[%s2] sm:$0xf]
    %v78 = vld [vmem:[%s2 + $0x4] sm:$0xf]
    %v79 = vld [vmem:[%s2 + $0x8] sm:$0xf]
    %v80 = vld [vmem:[%s2 + $0xc] sm:$0xf]
    %v81 = vld [vmem:[%s2 + $0x10] sm:$0xf]
    %v82 = vld [vmem:[%s2 + $0x14] sm:$0xf]
    %v83 = vld [vmem:[%s2 + $0x18] sm:$0xf]
    %v84 = vld [vmem:[%s2 + $0x1c] sm:$0xf]
    %v85 = vld [vmem:[%s2 + $0x20] sm:$0xf]
    %v86 = vld [vmem:[%s2 + $0x24] sm:$0xf]
    %v87 = vld [vmem:[%s2 + $0x28] sm:$0xf]
    %v88 = vld [vmem:[%s2 + $0x2c] sm:$0xf]
    %v89 = vld [vmem:[%s2 + $0x30] sm:$0xf]
    %v90 = vld [vmem:[%s2 + $0x34] sm:$0xf]
    %v91 = vld [vmem:[%s2 + $0x38] sm:$0xf]
    %v92 = vld [vmem:[%s2 + $0x3c] sm:$0xf]
    %v109 = vunpack.c.l.b16 %v77
    %v110 = vunpack.c.l.b16 %v78
    %v111 = vunpack.c.l.b16 %v79
    %v112 = vunpack.c.l.b16 %v80
    %v113 = vunpack.c.l.b16 %v81
    %v114 = vunpack.c.l.b16 %v82
    %v115 = vunpack.c.l.b16 %v83
    %v116 = vunpack.c.l.b16 %v84
    %v117 = vunpack.c.l.b16 %v85
    %v118 = vunpack.c.l.b16 %v86
    %v119 = vunpack.c.l.b16 %v87
    %v120 = vunpack.c.l.b16 %v88
    %v121 = vunpack.c.l.b16 %v89
    %v122 = vunpack.c.l.b16 %v90
    %v123 = vunpack.c.l.b16 %v91
    %v124 = vunpack.c.l.b16 %v92
    %v125 = vpack.c.b16 %v110, %v109
    %v126 = vpack.c.b16 %v112, %v111
    %v127 = vpack.c.b16 %v114, %v113
    %v128 = vpack.c.b16 %v116, %v115
    %v129 = vpack.c.b16 %v118, %v117
    %v130 = vpack.c.b16 %v120, %v119
    %v131 = vpack.c.b16 %v122, %v121
    %v132 = vpack.c.b16 %v124, %v123
    %141 = vmatpush.bf16.msra.mxu0 %v132
    %142 = vmatpush.bf16.msra.mxu0 %v131
    %143 = vmatpush.bf16.msra.mxu0 %v130
    %144 = vmatpush.bf16.msra.mxu0 %v129
    %145 = vmatpush.bf16.msra.mxu0 %v128
    %146 = vmatpush.bf16.msra.mxu0 %v127
    %147 = vmatpush.bf16.msra.mxu0 %v126
    %148 = vmatpush.bf16.msra.mxu0 %v125
    %149 = vmatmul.bf16.gmra.mxu0 %v60
    %v150 = vpop.f32.mrf.mxu0
    %v151 = vadd.f32 0.0, %v150
    %v152 = vpop.f32.mrf.mxu0
    %v153 = vadd.f32 0.0, %v152
    %154 = vdwg.mxu0
    %v171 = vunpack.c.l.b16 %v61
    %v172 = vunpack.c.l.b16 %v62
    %v173 = vunpack.c.l.b16 %v63
    %v174 = vunpack.c.l.b16 %v64
    %v175 = vunpack.c.l.b16 %v65
    %v176 = vunpack.c.l.b16 %v66
    %v177 = vunpack.c.l.b16 %v67
    %v178 = vunpack.c.l.b16 %v68
    %v179 = vunpack.c.l.b16 %v69
    %v180 = vunpack.c.l.b16 %v70
    %v181 = vunpack.c.l.b16 %v71
    %v182 = vunpack.c.l.b16 %v72
    %v183 = vunpack.c.l.b16 %v73
    %v184 = vunpack.c.l.b16 %v74
    %v185 = vunpack.c.l.b16 %v75
    %v186 = vunpack.c.l.b16 %v76
    %v187 = vpack.c.b16 %v172, %v171
    %v188 = vpack.c.b16 %v174, %v173
    %v189 = vpack.c.b16 %v176, %v175
    %v190 = vpack.c.b16 %v178, %v177
    %v191 = vpack.c.b16 %v180, %v179
    %v192 = vpack.c.b16 %v182, %v181
    %v193 = vpack.c.b16 %v184, %v183
    %v194 = vpack.c.b16 %v186, %v185
    %203 = vmatpush.bf16.msra.mxu0 %v194
    %204 = vmatpush.bf16.msra.mxu0 %v193
    %205 = vmatpush.bf16.msra.mxu0 %v192
    %206 = vmatpush.bf16.msra.mxu0 %v191
    %207 = vmatpush.bf16.msra.mxu0 %v190
    %208 = vmatpush.bf16.msra.mxu0 %v189
    %209 = vmatpush.bf16.msra.mxu0 %v188
    %210 = vmatpush.bf16.msra.mxu0 %v187
    %211 = vmatmul.bf16.gmra.mxu0 %v37
    %v212 = vpop.f32.mrf.mxu0
    %v213 = vadd.f32 %v151, %v212
    %v214 = vpop.f32.mrf.mxu0
    %v215 = vadd.f32 %v153, %v214
    %216 = vdwg.mxu0
    %vm217 = vcmask 523264
    %v218 = vsel %vm217, %v213, 0.0
    %219 = vadd.xlane.f32.xlu0 %v218
    %v220 = vpop.xlane.xlu0 %219
    %v221 = vsel %vm217, %v215, 0.0
    %222 = vadd.xlane.f32.xlu0 %v221
    %v223 = vpop.xlane.xlu0 %222
    %v224 = vrcp.pop 64.0
    %v225 = vmul.f32 64.0, %v224
    %v226 = vsub.f32 1.0, %v225
    %v227 = vmul.f32 %v224, %v226
    %v228 = vadd.f32 %v224, %v227
    %vm229 = vweird.f32 %v224
    %v230 = vsel %vm229, %v224, %v228
    %v231 = vmul.f32 %v220, %v230
    %v232 = vmul.f32 %v223, %v230
    %v233 = vsub.f32 %v213, %v231
    %v234 = vsub.f32 %v215, %v232
    %v235 = vmul.f32 %v233, %v233
    %v236 = vmul.f32 %v234, %v234
    %v237 = vsel %vm217, %v235, 0.0
    %238 = vadd.xlane.f32.xlu0 %v237
    %v239 = vpop.xlane.xlu0 %238
    %v240 = vsel %vm217, %v236, 0.0
    %241 = vadd.xlane.f32.xlu0 %v240
    %v242 = vpop.xlane.xlu0 %241
    %v243 = vmul.f32 %v239, %v230
    %v244 = vmul.f32 %v242, %v230
    %v245 = vadd.f32 %v243, 1e-07
    %v246 = vadd.f32 %v244, 1e-07
    %v247 = vrsqrt.pop %v245
    %v248 = vmul.f32 %v247, %v245
    %v249 = vmul.f32 %v248, %v247
    %v250 = vmul.f32 0.5, %v249
    %v251 = vsub.f32 1.5, %v250
    %v252 = vmul.f32 %v247, %v251
    %vm253 = vweird.f32 %v245
    %vm254 = vweird.f32 %v247
    %vm255 = vmor %vm253, %vm254
    %v256 = vsel %vm255, %v247, %v252
    %v257 = vrsqrt.pop %v246
    %v258 = vmul.f32 %v257, %v246
    %v259 = vmul.f32 %v258, %v257
    %v260 = vmul.f32 0.5, %v259
    %v261 = vsub.f32 1.5, %v260
    %v262 = vmul.f32 %v257, %v261
    %vm263 = vweird.f32 %v246
    %vm264 = vweird.f32 %v257
    %vm265 = vmor %vm263, %vm264
    %v266 = vsel %vm265, %v257, %v262
    %v267 = vmul.f32 %v233, %v256
    %v268 = vmul.f32 %v234, %v266
    %v269 = vld [vmem:[%s3] sm:$0x1]
    %v271 = vperm.slane %v269, 0
    %v273 = vmul.f32 %v267, %v271
    %v274 = vmul.f32 %v268, %v271
    %v275 = vld [vmem:[%s4] sm:$0x1]
    %v277 = vperm.slane %v275, 0
    %v279 = vadd.f32 %v273, %v277
    %v280 = vadd.f32 %v274, %v277
    %281 = vset.pattern.permute.xlu0 3
    %282 = vperm.xlu0 %281, %v21
    %v283 = vpop.permute.xlu0 %282
    %285 = vset.pattern.permute.xlu0 3
    %286 = vperm.xlu0 %285, %v22
    %v287 = vpop.permute.xlu0 %286
    %v289 = vmul.f32 %v279, %v283
    %v290 = vmul.f32 %v280, %v287
    %291 = vst.msk [vmem:[#allocation2] sm:$0xff] %vm217, %v289
    %292 = vst.msk [vmem:[#allocation2 + $0x8] sm:$0xff] %vm217, %v290
    // Predicated region
    $region22: #{tpu_custom_call.1} parent=1 // pred_check
      _
    $region23: #{tpu_custom_call.1} parent=1 // pred_check_branch
      %294 = sbr.rel (0) target = $region25
    $region24: #{tpu_custom_call.1} parent=1 // pred_region
      %296 = vsyncadd [#allocation3], 0
      %s297 = sshll.u32 [#allocation2], 4
      %s298 = int_to_ptr.vmem [resolvable:$true] %s297
      %s299 = sshll.u32 %s5, 4
      %s300 = int_to_ptr.hbm [resolvable:$true] %s299
      %305 = dma.vmem_to_hbm [thread:$0]  %s298, 256, %s300, [#allocation3], 128, 128, 8
    $region25: #{tpu_custom_call.1} parent=1 // pred_fallthru
      _
    // Predicated region
    $region26: #{tpu_custom_call.1} parent=1 // pred_check
      _
    $region27: #{tpu_custom_call.1} parent=1 // pred_check_branch
      %307 = sbr.rel (0) target = $region29
    $region28: #{tpu_custom_call.1} parent=1 // pred_region
      %309 = dma.done [#allocation3], 256
    $region29: #{tpu_custom_call.1} parent=1 // pred_fallthru
      _
    %310 = vsyncpa [#allocation3], 1

</llo_original>
